<compile_context>
chip_gen: v7x
topology: tpu7x:2x2x1
jax: 0.10.0
libtpu: 0.0.40
codegen_flags: <defaults>
</compile_context>

<pallas_src>
import jax
import jax.numpy as jnp
from jax import lax
from jax.experimental import pallas as pl
from jax.experimental.pallas import tpu as pltpu

_LANES = 128
_NEG_BIG = -1e30  # finite "minus infinity" for padded / out-of-range edges


def _make_kernel(n_valid: int, tb: int, has_mask: bool, needs_pad_mask: bool):
    """Kernel body. All arguments are static (trace-time) Python values."""

    def kernel(*refs):
        if has_mask:
            x_ref, bmat_ref, bias_ref, mask_ref, out_ref, m_ref, l_ref, mh_ref = refs
        else:
            x_ref, bmat_ref, bias_ref, out_ref, m_ref, l_ref, mh_ref = refs
            mask_ref = None

        i = pl.program_id(0)

        @pl.when(i == 0)
        def _():
            m_ref[...] = jnp.full((1, 1), _NEG_BIG, jnp.float32)
            l_ref[...] = jnp.zeros((1, 1), jnp.float32)

        # ---- streaming phase: logits for this tile (tb row-groups = tb*128 edges)
        x = x_ref[...].astype(jnp.float32)                    # [tb, 128*C], lane dense
        # Linear(C -> 1) for 128 edges per row-group as one MXU matmul against
        # the [128*C, 128] selection/weight matrix (lane-dense output).
        logits = jnp.dot(x, bmat_ref[...],
                         preferred_element_type=jnp.float32)        # [tb, 128]
        logits = jnp.maximum(logits + bias_ref[0], 0.0)              # + bias, ReLU
        if has_mask:
            logits = logits + mask_ref[...].astype(jnp.float32)      # additive mask
        if needs_pad_mask:
            # exclude padded / out-of-range edges from the softmax
            rid = ((i * tb + lax.broadcasted_iota(jnp.int32, (tb, _LANES), 0)) * _LANES
                   + lax.broadcasted_iota(jnp.int32, (tb, _LANES), 1))
            logits = jnp.where(rid < n_valid, logits, jnp.float32(_NEG_BIG))

        # ---- online softmax statistics (hidden under the next tile's DMA)
        m_old = m_ref[...]                                            # (1, 1)
        m_new = jnp.maximum(m_old, jnp.max(logits, keepdims=True))    # (1, 1)
        e = jnp.exp(logits - m_new)                                   # [tb, 128]
        l_ref[...] = l_ref[...] * jnp.exp(m_old - m_new) + jnp.sum(e, keepdims=True)
        m_ref[...] = m_new
        mh_ref[i] = jnp.broadcast_to(m_new, (1, _LANES))              # per-tile max history

        start = pl.multiple_of(i * tb, tb)
        out_ref[pl.ds(start, tb), :] = e                              # lane-dense store

        # ---- last grid step: per-tile max correction + exact 1/l normalization
        @pl.when(i == pl.num_programs(0) - 1)
        def _():
            m_fin = m_ref[...]
            inv_l = 1.0 / l_ref[...]                                  # exact divide

            def rescale(t, carry):
                s = pl.multiple_of(t * tb, tb)
                scale = jnp.exp(mh_ref[t] - m_fin) * inv_l            # (1, 128), <= 1/l
                out_ref[pl.ds(s, tb), :] = out_ref[pl.ds(s, tb), :] * scale
                return carry

            lax.fori_loop(0, pl.num_programs(0), rescale, 0)

    return kernel


def linear_edge_selector(x, weight, bias, mask=None, *, block_rows=None):
    """LinearEdgeSelector.forward, gumbel=False.

    x:      [N, C] edge features (any float dtype; upcast to f32 in-kernel)
    weight: [1, C] or [C]  (torch Linear weight, out_features=1)
    bias:   [1]
    mask:   optional [N, 1] (or [N]) additive mask
    block_rows: optional override for row-groups (of 128 edges) per grid step.
    returns [N, 1] float32 softmax over the edge axis (dim 0)

    Note: if the mask drives every logit to -inf the output is NaN, exactly as
    in the PyTorch reference.
    """
    n, c = x.shape

    # Pad the edge count to a multiple of 128 so the [NR, 128*C] flat view is a
    # free, contiguous reshape.  This copies x only when N % 128 != 0.
    # TODO(synk): handle the ragged tail without a full-array pad for very
    # large non-aligned N (e.g. a separate small pallas_call for the tail).
    n_pad = pl.cdiv(n, _LANES) * _LANES
    if n_pad != n:
        x = jnp.pad(x, ((0, n_pad - n), (0, 0)))
    nr = n_pad // _LANES
    x_flat = x.reshape(nr, _LANES * c)                     # free reshape, lane dense

    # Selection/weight matrix: B[e'*C + f, e] = w[f] * (e' == e), so that
    # (x_flat_tile @ B)[t, e] = sum_f x[128*t + e, f] * w[f]  (lane-dense logits).
    w = weight.reshape(-1).astype(jnp.float32)             # (C,)
    bmat = (jnp.eye(_LANES, dtype=jnp.float32)[:, None, :]
            * w[None, :, None]).reshape(_LANES * c, _LANES)
    b1 = bias.reshape(1).astype(jnp.float32)

    has_mask = mask is not None
    if has_mask:
        m_flat = mask.reshape(-1)
        if n_pad != n:
            m_flat = jnp.pad(m_flat, (0, n_pad - n))
        mask2d = m_flat.reshape(nr, _LANES)                # lane-dense mask

    # Row-groups of 128 edges per grid step: stream ~2 MiB of x per step.
    itemsize = x.dtype.itemsize
    row_bytes = _LANES * c * itemsize
    tb = max(8, ((2 << 20) // row_bytes) // 8 * 8)
    if block_rows is not None:
        tb = max(8, min(tb, (block_rows // 8) * 8))
    if nr <= tb:
        tb = nr                                            # single tile == full array
    num_tiles = pl.cdiv(nr, tb)
    r_total = num_tiles * tb                               # resident buffer rows
    needs_pad_mask = (r_total * _LANES != n)

    args = [x_flat, bmat, b1]
    in_specs = [
        pl.BlockSpec((tb, _LANES * c), lambda i: (i, 0)),          # x tiles (streamed)
        pl.BlockSpec((_LANES * c, _LANES), lambda i: (0, 0)),      # B (resident)
        pl.BlockSpec(memory_space=pltpu.MemorySpace.SMEM),         # bias scalar
    ]
    if has_mask:
        args.append(mask2d)
        in_specs.append(pl.BlockSpec((tb, _LANES), lambda i: (i, 0)))

    # VMEM budget from the true (dense) tile sizes; capped by chip capacity.
    x_tile_bytes = tb * _LANES * c * itemsize
    x_cast_bytes = tb * _LANES * c * 4 if itemsize != 4 else 0
    mask_tile_bytes = tb * _LANES * mask2d.dtype.itemsize if has_mask else 0
    bmat_bytes = _LANES * c * _LANES * 4
    out_bytes = r_total * _LANES * 4
    hist_bytes = num_tiles * _LANES * 4
    need = (2 * (x_tile_bytes + mask_tile_bytes) + 2 * bmat_bytes + 2 * out_bytes
            + x_cast_bytes + hist_bytes + (2 << 20))
    try:
        cap = int(pltpu.get_tpu_info().vmem_capacity_bytes)
    except Exception:
        cap = 64 << 20                                     # v7x physical VMEM
    vmem_limit = max(1 << 20, min(int(need), (cap * 3) // 4))
    # TODO(synk): for multi-million-edge graphs whose resident exp-buffer no
    # longer fits VMEM, switch to a two-pass (stats pass + normalize pass)
    # scheme with a streamed output.

    out = pl.pallas_call(
        _make_kernel(n, tb, has_mask, needs_pad_mask),
        out_shape=jax.ShapeDtypeStruct((r_total, _LANES), jnp.float32),
        grid=(num_tiles,),
        in_specs=in_specs,
        # constant index map => exp-values buffer stays resident in VMEM across
        # the whole (sequential) grid; written back to HBM once at the end.
        out_specs=pl.BlockSpec((r_total, _LANES), lambda i: (0, 0)),
        scratch_shapes=[
            pltpu.VMEM((1, 1), jnp.float32),                    # running max
            pltpu.VMEM((1, 1), jnp.float32),                    # running exp-sum
            pltpu.VMEM((num_tiles, 1, _LANES), jnp.float32),    # per-tile max history
        ],
        compiler_params=pltpu.CompilerParams(
            # TODO(synk): on v7x, split the edge range across both TensorCores
            # (leading size-2 "parallel" axis + partial-stat combine).
            dimension_semantics=("arbitrary",),
            vmem_limit_bytes=int(vmem_limit)),
    )(*args)

    # TODO(synk): gumbel=True branch (gumbel_softmax hard sampling + index dot
    # returning a long index) is not implemented; only the softmax path is.
    return out.reshape(-1)[:n].reshape(n, 1)


if __name__ == "__main__":
    key = jax.random.PRNGKey(0)
    k_x, k_w, k_b, k_m = jax.random.split(key, 4)

    # num_edges x in_channels; phi(u,v) has 8 features per the module docstring.
    # N=2000 exercises row padding (2000 % 128 != 0); the block_rows=8 run below
    # exercises the multi-tile online-softmax + rescale path.
    N, C = 2000, 8
    x = jax.random.normal(k_x, (N, C), dtype=jnp.float32)

    # torch.nn.Linear-style init (uniform +/- 1/sqrt(C)).
    bound = 1.0 / (C ** 0.5)
    weight = jax.random.uniform(k_w, (1, C), minval=-bound, maxval=bound,
                                dtype=jnp.float32)
    bias = jax.random.uniform(k_b, (1,), minval=-bound, maxval=bound,
                              dtype=jnp.float32)
    # Additive mask disallowing ~10% of edges.
    mask = jnp.where(jax.random.uniform(k_m, (N, 1)) < 0.1,
                     -1e9, 0.0).astype(jnp.float32)

    def ref_fn(x, weight, bias, mask):
        logits = jnp.maximum(x @ weight.T + bias, 0.0)
        if mask is not None:
            logits = logits + mask
        return jax.nn.softmax(logits, axis=0)

    # 1) mask=None path (mask input omitted from the kernel entirely)
    out0 = jax.block_until_ready(linear_edge_selector(x, weight, bias))
    ref0 = ref_fn(x, weight, bias, None)
    assert out0.shape == (N, 1)
    assert jnp.allclose(out0, ref0, atol=1e-6, rtol=1e-2)
    assert jnp.allclose(jnp.sum(out0), 1.0, atol=1e-3)

    # 2) masked path, single tile
    out1 = jax.block_until_ready(linear_edge_selector(x, weight, bias, mask))
    ref1 = ref_fn(x, weight, bias, mask)
    assert out1.shape == (N, 1)
    assert jnp.allclose(out1, ref1, atol=1e-6, rtol=1e-2)
    assert jnp.allclose(jnp.sum(out1), 1.0, atol=1e-3)

    # 3) masked path, forced small tiles -> multi-step online softmax + rescale
    out2 = jax.block_until_ready(
        linear_edge_selector(x, weight, bias, mask, block_rows=8))
    assert out2.shape == (N, 1)
    assert jnp.allclose(out2, ref1, atol=1e-6, rtol=1e-2)
    assert jnp.allclose(jnp.sum(out2), 1.0, atol=1e-3)

    print("KERNEL_OK")
</pallas_src>

<mosaic_0001>
module attributes {stable_mosaic.version = 11 : i64} {
  func.func @kernel(%arg0: i32, %arg1: memref<16x1024xf32, #tpu.memory_space<vmem>>, %arg2: memref<1024x128xf32, #tpu.memory_space<vmem>>, %arg3: memref<1xf32, #tpu.memory_space<smem>>, %arg4: memref<16x128xf32, #tpu.memory_space<vmem>>, %arg5: memref<1x1xf32, #tpu.memory_space<vmem>>, %arg6: memref<1x1xf32, #tpu.memory_space<vmem>>, %arg7: memref<1x1x128xf32, #tpu.memory_space<vmem>>) attributes {dimension_semantics = [#tpu.dimension_semantics<arbitrary>], iteration_bounds = array<i64: 1>, scalar_prefetch = 0 : i64, scratch_operands = 3 : i64, tpu.core_type = #tpu.core_type<tc>, window_params = [{transform_indices = @transform_0, window_bounds = array<i64: 16, 1024>}, {pipeline_mode = #tpu.pipeline_mode<synchronous>, transform_indices = @transform_1, window_bounds = array<i64: 1024, 128>}, {transform_indices = @transform_2, window_bounds = array<i64: 1>}, {pipeline_mode = #tpu.pipeline_mode<synchronous>, transform_indices = @transform_3, window_bounds = array<i64: 16, 128>}]} {
    %c0_i32 = arith.constant 0 : i32
    %0 = arith.cmpi eq, %arg0, %c0_i32 : i32
    %1 = arith.extui %0 : i1 to i32
    %c0_i32_0 = arith.constant 0 : i32
    %2 = arith.cmpi ne, %1, %c0_i32_0 : i32
    scf.if %2 {
      %cst_23 = arith.constant -1.000000e+30 : f32
      %58 = vector.broadcast %cst_23 : f32 to vector<1x1xf32>
      %c0_24 = arith.constant 0 : index
      %c0_25 = arith.constant 0 : index
      %59 = vector.load %arg5[%c0_24, %c0_25] : memref<1x1xf32, #tpu.memory_space<vmem>>, vector<1x1xf32>
      tpu.vector_store %arg5[%c0_24, %c0_25], %58 {strides = array<i32>} : memref<1x1xf32, #tpu.memory_space<vmem>>, vector<1x1xf32>,
      %cst_26 = arith.constant 0.000000e+00 : f32
      %60 = vector.broadcast %cst_26 : f32 to vector<1x1xf32>
      %c0_27 = arith.constant 0 : index
      %c0_28 = arith.constant 0 : index
      %61 = vector.load %arg6[%c0_27, %c0_28] : memref<1x1xf32, #tpu.memory_space<vmem>>, vector<1x1xf32>
      tpu.vector_store %arg6[%c0_27, %c0_28], %60 {strides = array<i32>} : memref<1x1xf32, #tpu.memory_space<vmem>>, vector<1x1xf32>,
    } else {
    }
    %c0 = arith.constant 0 : index
    %c0_1 = arith.constant 0 : index
    %3 = vector.load %arg1[%c0, %c0_1] : memref<16x1024xf32, #tpu.memory_space<vmem>>, vector<16x1024xf32>
    %c0_2 = arith.constant 0 : index
    %c0_3 = arith.constant 0 : index
    %4 = vector.load %arg2[%c0_2, %c0_3] : memref<1024x128xf32, #tpu.memory_space<vmem>>, vector<1024x128xf32>
    %cst = arith.constant dense<0.000000e+00> : vector<16x128xf32>
    %5 = tpu.matmul %3, %4, %cst {dimension_numbers = #tpu.dot_dimension_numbers<[1], [0], [0], [1], [0, 0, 1, 1], [], []>} : vector<16x1024xf32>, vector<1024x128xf32>, vector<16x128xf32> -> vector<16x128xf32>
    %c0_4 = arith.constant 0 : index
    %6 = memref.load %arg3[%c0_4] : memref<1xf32, #tpu.memory_space<smem>>
    %7 = vector.broadcast %6 : f32 to vector<16x128xf32>
    %8 = arith.addf %5, %7 : vector<16x128xf32>
    %cst_5 = arith.constant 0.000000e+00 : f32
    %9 = vector.broadcast %cst_5 : f32 to vector<16x128xf32>
    %10 = arith.maximumf %8, %9 : vector<16x128xf32>
    %c16_i32 = arith.constant 16 : i32
    %11 = arith.muli %arg0, %c16_i32 : i32
    %12 = tpu.iota {dimensions = array<i32: 0>} : vector<16x128xi32>
    %13 = vector.broadcast %11 : i32 to vector<16x128xi32>
    %14 = arith.addi %13, %12 : vector<16x128xi32>
    %c128_i32 = arith.constant 128 : i32
    %15 = vector.broadcast %c128_i32 : i32 to vector<16x128xi32>
    %16 = arith.muli %14, %15 : vector<16x128xi32>
    %17 = tpu.iota {dimensions = array<i32: 1>} : vector<16x128xi32>
    %18 = arith.addi %16, %17 : vector<16x128xi32>
    %c2000_i32 = arith.constant 2000 : i32
    %19 = vector.broadcast %c2000_i32 : i32 to vector<16x128xi32>
    %20 = arith.cmpi slt, %18, %19 : vector<16x128xi32>
    %cst_6 = arith.constant -1.000000e+30 : f32
    %21 = vector.broadcast %cst_6 : f32 to vector<16x128xf32>
    %22 = arith.select %20, %10, %21 : vector<16x128xi1>, vector<16x128xf32>
    %c0_7 = arith.constant 0 : index
    %c0_8 = arith.constant 0 : index
    %23 = vector.load %arg5[%c0_7, %c0_8] : memref<1x1xf32, #tpu.memory_space<vmem>>, vector<1x1xf32>
    %24 = vector.shape_cast %22 : vector<16x128xf32> to vector<1x16x128xf32>
    %cst_9 = arith.constant dense<0xFF800000> : vector<1xf32>
    %25 = vector.multi_reduction <maximumf>, %24, %cst_9 [1, 2] : vector<1x16x128xf32> to vector<1xf32>
    %26 = vector.shape_cast %25 : vector<1xf32> to vector<1x1x1xf32>
    %27 = vector.extract %26[0, 0, 0] : f32 from vector<1x1x1xf32>
    %28 = vector.broadcast %27 : f32 to vector<1x1xf32>
    %29 = arith.maximumf %23, %28 : vector<1x1xf32>
    %30 = vector.broadcast %29 : vector<1x1xf32> to vector<16x128xf32>
    %31 = arith.subf %22, %30 : vector<16x128xf32>
    %32 = math.exp %31 : vector<16x128xf32>
    %c0_10 = arith.constant 0 : index
    %c0_11 = arith.constant 0 : index
    %33 = vector.load %arg6[%c0_10, %c0_11] : memref<1x1xf32, #tpu.memory_space<vmem>>, vector<1x1xf32>
    %34 = arith.subf %23, %29 : vector<1x1xf32>
    %35 = math.exp %34 : vector<1x1xf32>
    %36 = arith.mulf %33, %35 : vector<1x1xf32>
    %37 = vector.shape_cast %32 : vector<16x128xf32> to vector<1x16x128xf32>
    %cst_12 = arith.constant dense<0.000000e+00> : vector<1xf32>
    %38 = vector.multi_reduction <add>, %37, %cst_12 [1, 2] : vector<1x16x128xf32> to vector<1xf32>
    %39 = vector.shape_cast %38 : vector<1xf32> to vector<1x1x1xf32>
    %40 = vector.extract %39[0, 0, 0] : f32 from vector<1x1x1xf32>
    %41 = vector.broadcast %40 : f32 to vector<1x1xf32>
    %42 = arith.addf %36, %41 : vector<1x1xf32>
    %c0_13 = arith.constant 0 : index
    %c0_14 = arith.constant 0 : index
    %43 = vector.load %arg6[%c0_13, %c0_14] : memref<1x1xf32, #tpu.memory_space<vmem>>, vector<1x1xf32>
    tpu.vector_store %arg6[%c0_13, %c0_14], %42 {strides = array<i32>} : memref<1x1xf32, #tpu.memory_space<vmem>>, vector<1x1xf32>,
    %c0_15 = arith.constant 0 : index
    %c0_16 = arith.constant 0 : index
    %44 = vector.load %arg5[%c0_15, %c0_16] : memref<1x1xf32, #tpu.memory_space<vmem>>, vector<1x1xf32>
    tpu.vector_store %arg5[%c0_15, %c0_16], %29 {strides = array<i32>} : memref<1x1xf32, #tpu.memory_space<vmem>>, vector<1x1xf32>,
    %45 = vector.shape_cast %29 : vector<1x1xf32> to vector<1x1xf32>
    %46 = vector.broadcast %45 : vector<1x1xf32> to vector<1x128xf32>
    %47 = arith.index_cast %arg0 : i32 to index
    %c0_17 = arith.constant 0 : index
    %c0_18 = arith.constant 0 : index
    %48 = vector.load %arg7[%47, %c0_17, %c0_18] : memref<1x1x128xf32, #tpu.memory_space<vmem>>, vector<1x1x128xf32>
    %49 = vector.shape_cast %48 : vector<1x1x128xf32> to vector<1x128xf32>
    %50 = vector.shape_cast %46 : vector<1x128xf32> to vector<1x1x128xf32>
    tpu.vector_store %arg7[%47, %c0_17, %c0_18], %50 {strides = array<i32>} : memref<1x1x128xf32, #tpu.memory_space<vmem>>, vector<1x1x128xf32>,
    %c16_i32_19 = arith.constant 16 : i32
    %51 = arith.muli %arg0, %c16_i32_19 : i32
    %52 = tpu.assume_multiple %51, 16 : i32
    %53 = arith.index_cast %52 : i32 to index
    %c0_20 = arith.constant 0 : index
    %54 = vector.load %arg4[%53, %c0_20] : memref<16x128xf32, #tpu.memory_space<vmem>>, vector<16x128xf32>
    tpu.vector_store %arg4[%53, %c0_20], %32 {strides = array<i32>} : memref<16x128xf32, #tpu.memory_space<vmem>>, vector<16x128xf32>,
    %c0_i32_21 = arith.constant 0 : i32
    %55 = arith.cmpi eq, %arg0, %c0_i32_21 : i32
    %56 = arith.extui %55 : i1 to i32
    %c0_i32_22 = arith.constant 0 : i32
    %57 = arith.cmpi ne, %56, %c0_i32_22 : i32
    scf.if %57 {
      %c0_23 = arith.constant 0 : index
      %c0_24 = arith.constant 0 : index
      %58 = vector.load %arg5[%c0_23, %c0_24] : memref<1x1xf32, #tpu.memory_space<vmem>>, vector<1x1xf32>
      %c0_25 = arith.constant 0 : index
      %c0_26 = arith.constant 0 : index
      %59 = vector.load %arg6[%c0_25, %c0_26] : memref<1x1xf32, #tpu.memory_space<vmem>>, vector<1x1xf32>
      %cst_27 = arith.constant 1.000000e+00 : f32
      %60 = vector.broadcast %cst_27 : f32 to vector<1x1xf32>
      %61 = arith.divf %60, %59 : vector<1x1xf32>
      %c0_i32_28 = arith.constant 0 : i32
      %c16_i32_29 = arith.constant 16 : i32
      %62 = arith.muli %c0_i32_28, %c16_i32_29 : i32
      %63 = tpu.assume_multiple %62, 16 : i32
      %64 = arith.index_cast %c0_i32_28 : i32 to index
      %c0_30 = arith.constant 0 : index
      %c0_31 = arith.constant 0 : index
      %65 = vector.load %arg7[%64, %c0_30, %c0_31] : memref<1x1x128xf32, #tpu.memory_space<vmem>>, vector<1x1x128xf32>
      %66 = vector.shape_cast %65 : vector<1x1x128xf32> to vector<1x128xf32>
      %67 = vector.broadcast %58 : vector<1x1xf32> to vector<1x128xf32>
      %68 = arith.subf %66, %67 : vector<1x128xf32>
      %69 = math.exp %68 : vector<1x128xf32>
      %70 = vector.broadcast %61 : vector<1x1xf32> to vector<1x128xf32>
      %71 = arith.mulf %69, %70 : vector<1x128xf32>
      %72 = arith.index_cast %63 : i32 to index
      %c0_32 = arith.constant 0 : index
      %73 = vector.load %arg4[%72, %c0_32] : memref<16x128xf32, #tpu.memory_space<vmem>>, vector<16x128xf32>
      %74 = vector.broadcast %71 : vector<1x128xf32> to vector<16x128xf32>
      %75 = arith.mulf %73, %74 : vector<16x128xf32>
      %76 = arith.index_cast %63 : i32 to index
      %c0_33 = arith.constant 0 : index
      %77 = vector.load %arg4[%76, %c0_33] : memref<16x128xf32, #tpu.memory_space<vmem>>, vector<16x128xf32>
      tpu.vector_store %arg4[%76, %c0_33], %75 {strides = array<i32>} : memref<16x128xf32, #tpu.memory_space<vmem>>, vector<16x128xf32>,
      %c1_i32 = arith.constant 1 : i32
    } else {
    }
    return
  }
  func.func @transform_0(%arg0: i32) -> (i32, i32) {
    %c0_i32 = arith.constant 0 : i32
    %c0_i32_0 = arith.constant 0 : i32
    return %arg0, %c0_i32 : i32, i32
  }
  func.func @transform_1(%arg0: i32) -> (i32, i32) {
    %c0_i32 = arith.constant 0 : i32
    %c0_i32_0 = arith.constant 0 : i32
    %c0_i32_1 = arith.constant 0 : i32
    return %c0_i32, %c0_i32_0 : i32, i32
  }
  func.func @transform_2(%arg0: i32) -> i32 {
    %c0_i32 = arith.constant 0 : i32
    %c0_i32_0 = arith.constant 0 : i32
    return %c0_i32 : i32
  }
  func.func @transform_3(%arg0: i32) -> (i32, i32) {
    %c0_i32 = arith.constant 0 : i32
    %c0_i32_0 = arith.constant 0 : i32
    %c0_i32_1 = arith.constant 0 : i32
    return %c0_i32, %c0_i32_0 : i32, i32
  }
}

</mosaic_0001>

<llo_original>
// kernel: tpu_custom_call.1
$region0: #{tpu_custom_call.1}
  #allocation0 [shape = 'u32[]', space=smem, size = 0x4, offset = 0x4, fixed_abs, tag = 'smem constant byte address 0x4 - core index']
  #allocation1 [shape = 'u32[144,128]{1,0:T(1,128)}', space=vmem, size = 0x12000, scoped, tag = 'internal scratch']
  #allocation2 [shape = 'f32[1,1]{1,0:T(1,128)}', space=vmem, size = 0x200, scoped, tag = 'scratch operand']
  #allocation3 [shape = 'f32[1,1]{1,0:T(1,128)}', space=vmem, size = 0x200, scoped, tag = 'scratch operand']
  #allocation4 [shape = 'f32[1,1,128]{2,1,0:T(1,128)}', space=vmem, size = 0x200, scoped, tag = 'scratch operand']
  #allocation5 [shape = 'f32[1]{0:T(128)S(6)}', space=smem, size = 0x200, scoped, tag = 'scoped memory for tpu_custom_call.1']
  %s0 = inlined_call_operand.hbm [shape: f32[16,1024], index: 0, kind: input, shape index: {}]
  %s1 = inlined_call_operand.hbm [shape: f32[1024,128], index: 1, kind: input, shape index: {}]
  %s2 = inlined_call_operand.<no memory space> [shape: f32[1], index: 2, kind: input, shape index: {}]
  %s3 = inlined_call_operand.hbm [shape: f32[16,128], index: 3, kind: output, shape index: {}]
  %s4 = sld [smem:[#allocation0]]
  $region38: #{tpu_custom_call.1} parent=0
    _
  %s6 = ssub.s32 1, %s4
  %s7 = scalar_select 0, %s6, %s4
  %8 = sst [smem:[#allocation5]] %s2
  $region1: #{tpu_custom_call.1} parent=0
    #allocation6 [shape = 'u8[65536]{0}', space=vmem, size = 0x10000, scoped, tag = 'input window, operand 0, single buffered']
    #allocation7 [shape = 's32[1]{0}', space=sflag, size = 0x4, scoped, tag = 'scoped memory for tpu_custom_call.1']
    #allocation8 [shape = 's32[1]{0}', space=sflag, size = 0x4, scoped, tag = 'scoped memory for tpu_custom_call.1']
    #allocation9 [shape = 'u8[524288]{0}', space=vmem, size = 0x80000, scoped, tag = 'input window, operand 1, single buffered']
    #allocation10 [shape = 's32[1]{0}', space=sflag, size = 0x4, scoped, tag = 'scoped memory for tpu_custom_call.1']
    #allocation11 [shape = 'u8[8192]{0}', space=vmem, size = 0x2000, scoped, tag = 'output window, operand 0, single buffered']
    %9 = vsyncpa [#allocation7], 0
    %10 = vsyncpa [#allocation10], 0
    %11 = vsyncpa [#allocation8], 0
    // Predicated region
    $region2: #{tpu_custom_call.1} parent=1 // pred_check
      _
    $region3: #{tpu_custom_call.1} parent=1 // pred_check_branch
      %13 = sbr.rel (0) target = $region5
    $region4: #{tpu_custom_call.1} parent=1 // pred_region
      %s15 = ssub.s32 2048, 2048
      %16 = vsyncadd [#allocation7], %s15
      %s17 = sshll.u32 [#allocation6], 4
      %s18 = int_to_ptr.vmem [resolvable:$true] %s17
      %23 = dma.hbm_to_vmem [thread:$0]  %s0, 2048, %s18, [#allocation7], 1024, 1024, 64
    $region5: #{tpu_custom_call.1} parent=1 // pred_fallthru
      _
    // Predicated region
    $region6: #{tpu_custom_call.1} parent=1 // pred_check
      _
    $region7: #{tpu_custom_call.1} parent=1 // pred_check_branch
      %25 = sbr.rel (0) target = $region9
    $region8: #{tpu_custom_call.1} parent=1 // pred_region
      %s27 = ssub.s32 16384, 16384
      %28 = vsyncadd [#allocation10], %s27
      %s29 = sshll.u32 [#allocation9], 4
      %s30 = int_to_ptr.vmem [resolvable:$true] %s29
      %35 = dma.hbm_to_vmem [thread:$0]  %s1, 16384, %s30, [#allocation10], 128, 128, 8
    $region9: #{tpu_custom_call.1} parent=1 // pred_fallthru
      _
    // Predicated region
    $region10: #{tpu_custom_call.1} parent=1 // pred_check
      _
    $region11: #{tpu_custom_call.1} parent=1 // pred_check_branch
      %37 = sbr.rel (0) target = $region13
    $region12: #{tpu_custom_call.1} parent=1 // pred_region
      _
    $region13: #{tpu_custom_call.1} parent=1 // pred_fallthru
      _
    // Predicated region
    $region14: #{tpu_custom_call.1} parent=1 // pred_check
      _
    $region15: #{tpu_custom_call.1} parent=1 // pred_check_branch
      %39 = sbr.rel (0) target = $region17
    $region16: #{tpu_custom_call.1} parent=1 // pred_region
      %40 = dma.done [#allocation7], 2048
    $region17: #{tpu_custom_call.1} parent=1 // pred_fallthru
      _
    // Predicated region
    $region18: #{tpu_custom_call.1} parent=1 // pred_check
      _
    $region19: #{tpu_custom_call.1} parent=1 // pred_check_branch
      %42 = sbr.rel (0) target = $region21
    $region20: #{tpu_custom_call.1} parent=1 // pred_region
      %43 = dma.done [#allocation10], 16384
    $region21: #{tpu_custom_call.1} parent=1 // pred_fallthru
      _
    %p44 = scmp.eq.s32.totalorder 0, 0
    // Predicated region
    $region22: #{tpu_custom_call.1} parent=1 // pred_check
      %p45 = pneg %p44
    $region23: #{tpu_custom_call.1} parent=1 // pred_check_branch
      %47 = sbr.rel (%p45) target = $region25
    $region24: #{tpu_custom_call.1} parent=1 // pred_region
      %vm48 = vcmask 0
      %49 = vst.msk [vmem:[#allocation2] sm:$0x1] %vm48, -1e+30
      %50 = vst.msk [vmem:[#allocation3] sm:$0x1] %vm48, 0.0
    $region25: #{tpu_custom_call.1} parent=1 // pred_fallthru
      _
    %v51 = vld [vmem:[#allocation6] sm:$0xff]
    %v52 = vld [vmem:[#allocation6 + $0x8] sm:$0xff]
    %v53 = vld [vmem:[#allocation6 + $0x10] sm:$0xff]
    %v54 = vld [vmem:[#allocation6 + $0x18] sm:$0xff]
    %v55 = vld [vmem:[#allocation6 + $0x20] sm:$0xff]
    %v56 = vld [vmem:[#allocation6 + $0x28] sm:$0xff]
    %v57 = vld [vmem:[#allocation6 + $0x30] sm:$0xff]
    %v58 = vld [vmem:[#allocation6 + $0x38] sm:$0xff]
    %v59 = vld [vmem:[#allocation6 + $0x40] sm:$0xff]
    %v60 = vld [vmem:[#allocation6 + $0x48] sm:$0xff]
    %v61 = vld [vmem:[#allocation6 + $0x50] sm:$0xff]
    %v62 = vld [vmem:[#allocation6 + $0x58] sm:$0xff]
    %v63 = vld [vmem:[#allocation6 + $0x60] sm:$0xff]
    %v64 = vld [vmem:[#allocation6 + $0x68] sm:$0xff]
    %v65 = vld [vmem:[#allocation6 + $0x70] sm:$0xff]
    %v66 = vld [vmem:[#allocation6 + $0x78] sm:$0xff]
    %v67 = vld [vmem:[#allocation9] sm:$0xff]
    %v68 = vld [vmem:[#allocation9 + $0x8] sm:$0xff]
    %v69 = vld [vmem:[#allocation9 + $0x10] sm:$0xff]
    %v70 = vld [vmem:[#allocation9 + $0x18] sm:$0xff]
    %v71 = vld [vmem:[#allocation9 + $0x20] sm:$0xff]
    %v72 = vld [vmem:[#allocation9 + $0x28] sm:$0xff]
    %v73 = vld [vmem:[#allocation9 + $0x30] sm:$0xff]
    %v74 = vld [vmem:[#allocation9 + $0x38] sm:$0xff]
    %v75 = vld [vmem:[#allocation9 + $0x40] sm:$0xff]
    %v76 = vld [vmem:[#allocation9 + $0x48] sm:$0xff]
    %v77 = vld [vmem:[#allocation9 + $0x50] sm:$0xff]
    %v78 = vld [vmem:[#allocation9 + $0x58] sm:$0xff]
    %v79 = vld [vmem:[#allocation9 + $0x60] sm:$0xff]
    %v80 = vld [vmem:[#allocation9 + $0x68] sm:$0xff]
    %v81 = vld [vmem:[#allocation9 + $0x70] sm:$0xff]
    %v82 = vld [vmem:[#allocation9 + $0x78] sm:$0xff]
    %v83 = vld [vmem:[#allocation9 + $0x80] sm:$0xff]
    %v84 = vld [vmem:[#allocation9 + $0x88] sm:$0xff]
    %v85 = vld [vmem:[#allocation9 + $0x90] sm:$0xff]
    %v86 = vld [vmem:[#allocation9 + $0x98] sm:$0xff]
    %v87 = vld [vmem:[#allocation9 + $0xa0] sm:$0xff]
    %v88 = vld [vmem:[#allocation9 + $0xa8] sm:$0xff]
    %v89 = vld [vmem:[#allocation9 + $0xb0] sm:$0xff]
    %v90 = vld [vmem:[#allocation9 + $0xb8] sm:$0xff]
    %v91 = vld [vmem:[#allocation9 + $0xc0] sm:$0xff]
    %v92 = vld [vmem:[#allocation9 + $0xc8] sm:$0xff]
    %v93 = vld [vmem:[#allocation9 + $0xd0] sm:$0xff]
    %v94 = vld [vmem:[#allocation9 + $0xd8] sm:$0xff]
    %v95 = vld [vmem:[#allocation9 + $0xe0] sm:$0xff]
    %v96 = vld [vmem:[#allocation9 + $0xe8] sm:$0xff]
    %v97 = vld [vmem:[#allocation9 + $0xf0] sm:$0xff]
    %v98 = vld [vmem:[#allocation9 + $0xf8] sm:$0xff]
    %v99 = vld [vmem:[#allocation9 + $0x100] sm:$0xff]
    %v100 = vld [vmem:[#allocation9 + $0x108] sm:$0xff]
    %v101 = vld [vmem:[#allocation9 + $0x110] sm:$0xff]
    %v102 = vld [vmem:[#allocation9 + $0x118] sm:$0xff]
    %v103 = vld [vmem:[#allocation9 + $0x120] sm:$0xff]
    %v104 = vld [vmem:[#allocation9 + $0x128] sm:$0xff]
    %v105 = vld [vmem:[#allocation9 + $0x130] sm:$0xff]
    %v106 = vld [vmem:[#allocation9 + $0x138] sm:$0xff]
    %v107 = vld [vmem:[#allocation9 + $0x140] sm:$0xff]
    %v108 = vld [vmem:[#allocation9 + $0x148] sm:$0xff]
    %v109 = vld [vmem:[#allocation9 + $0x150] sm:$0xff]
    %v110 = vld [vmem:[#allocation9 + $0x158] sm:$0xff]
    %v111 = vld [vmem:[#allocation9 + $0x160] sm:$0xff]
    %v112 = vld [vmem:[#allocation9 + $0x168] sm:$0xff]
    %v113 = vld [vmem:[#allocation9 + $0x170] sm:$0xff]
    %v114 = vld [vmem:[#allocation9 + $0x178] sm:$0xff]
    %v115 = vld [vmem:[#allocation9 + $0x180] sm:$0xff]
    %v116 = vld [vmem:[#allocation9 + $0x188] sm:$0xff]
    %v117 = vld [vmem:[#allocation9 + $0x190] sm:$0xff]
    %v118 = vld [vmem:[#allocation9 + $0x198] sm:$0xff]
    %v119 = vld [vmem:[#allocation9 + $0x1a0] sm:$0xff]
    %v120 = vld [vmem:[#allocation9 + $0x1a8] sm:$0xff]
    %v121 = vld [vmem:[#allocation9 + $0x1b0] sm:$0xff]
    %v122 = vld [vmem:[#allocation9 + $0x1b8] sm:$0xff]
    %v123 = vld [vmem:[#allocation9 + $0x1c0] sm:$0xff]
    %v124 = vld [vmem:[#allocation9 + $0x1c8] sm:$0xff]
    %v125 = vld [vmem:[#allocation9 + $0x1d0] sm:$0xff]
    %v126 = vld [vmem:[#allocation9 + $0x1d8] sm:$0xff]
    %v127 = vld [vmem:[#allocation9 + $0x1e0] sm:$0xff]
    %v128 = vld [vmem:[#allocation9 + $0x1e8] sm:$0xff]
    %v129 = vld [vmem:[#allocation9 + $0x1f0] sm:$0xff]
    %v130 = vld [vmem:[#allocation9 + $0x1f8] sm:$0xff]
    %v131 = vld [vmem:[#allocation9 + $0x200] sm:$0xff]
    %v132 = vld [vmem:[#allocation9 + $0x208] sm:$0xff]
    %v133 = vld [vmem:[#allocation9 + $0x210] sm:$0xff]
    %v134 = vld [vmem:[#allocation9 + $0x218] sm:$0xff]
    %v135 = vld [vmem:[#allocation9 + $0x220] sm:$0xff]
    %v136 = vld [vmem:[#allocation9 + $0x228] sm:$0xff]
    %v137 = vld [vmem:[#allocation9 + $0x230] sm:$0xff]
    %v138 = vld [vmem:[#allocation9 + $0x238] sm:$0xff]
    %v139 = vld [vmem:[#allocation9 + $0x240] sm:$0xff]
    %v140 = vld [vmem:[#allocation9 + $0x248] sm:$0xff]
    %v141 = vld [vmem:[#allocation9 + $0x250] sm:$0xff]
    %v142 = vld [vmem:[#allocation9 + $0x258] sm:$0xff]
    %v143 = vld [vmem:[#allocation9 + $0x260] sm:$0xff]
    %v144 = vld [vmem:[#allocation9 + $0x268] sm:$0xff]
    %v145 = vld [vmem:[#allocation9 + $0x270] sm:$0xff]
    %v146 = vld [vmem:[#allocation9 + $0x278] sm:$0xff]
    %v147 = vld [vmem:[#allocation9 + $0x280] sm:$0xff]
    %v148 = vld [vmem:[#allocation9 + $0x288] sm:$0xff]
    %v149 = vld [vmem:[#allocation9 + $0x290] sm:$0xff]
    %v150 = vld [vmem:[#allocation9 + $0x298] sm:$0xff]
    %v151 = vld [vmem:[#allocation9 + $0x2a0] sm:$0xff]
    %v152 = vld [vmem:[#allocation9 + $0x2a8] sm:$0xff]
    %v153 = vld [vmem:[#allocation9 + $0x2b0] sm:$0xff]
    %v154 = vld [vmem:[#allocation9 + $0x2b8] sm:$0xff]
    %v155 = vld [vmem:[#allocation9 + $0x2c0] sm:$0xff]
    %v156 = vld [vmem:[#allocation9 + $0x2c8] sm:$0xff]
    %v157 = vld [vmem:[#allocation9 + $0x2d0] sm:$0xff]
    %v158 = vld [vmem:[#allocation9 + $0x2d8] sm:$0xff]
    %v159 = vld [vmem:[#allocation9 + $0x2e0] sm:$0xff]
    %v160 = vld [vmem:[#allocation9 + $0x2e8] sm:$0xff]
    %v161 = vld [vmem:[#allocation9 + $0x2f0] sm:$0xff]
    %v162 = vld [vmem:[#allocation9 + $0x2f8] sm:$0xff]
    %v163 = vld [vmem:[#allocation9 + $0x300] sm:$0xff]
    %v164 = vld [vmem:[#allocation9 + $0x308] sm:$0xff]
    %v165 = vld [vmem:[#allocation9 + $0x310] sm:$0xff]
    %v166 = vld [vmem:[#allocation9 + $0x318] sm:$0xff]
    %v167 = vld [vmem:[#allocation9 + $0x320] sm:$0xff]
    %v168 = vld [vmem:[#allocation9 + $0x328] sm:$0xff]
    %v169 = vld [vmem:[#allocation9 + $0x330] sm:$0xff]
    %v170 = vld [vmem:[#allocation9 + $0x338] sm:$0xff]
    %v171 = vld [vmem:[#allocation9 + $0x340] sm:$0xff]
    %v172 = vld [vmem:[#allocation9 + $0x348] sm:$0xff]
    %v173 = vld [vmem:[#allocation9 + $0x350] sm:$0xff]
    %v174 = vld [vmem:[#allocation9 + $0x358] sm:$0xff]
    %v175 = vld [vmem:[#allocation9 + $0x360] sm:$0xff]
    %v176 = vld [vmem:[#allocation9 + $0x368] sm:$0xff]
    %v177 = vld [vmem:[#allocation9 + $0x370] sm:$0xff]
    %v178 = vld [vmem:[#allocation9 + $0x378] sm:$0xff]
    %v179 = vld [vmem:[#allocation9 + $0x380] sm:$0xff]
    %v180 = vld [vmem:[#allocation9 + $0x388] sm:$0xff]
    %v181 = vld [vmem:[#allocation9 + $0x390] sm:$0xff]
    %v182 = vld [vmem:[#allocation9 + $0x398] sm:$0xff]
    %v183 = vld [vmem:[#allocation9 + $0x3a0] sm:$0xff]
    %v184 = vld [vmem:[#allocation9 + $0x3a8] sm:$0xff]
    %v185 = vld [vmem:[#allocation9 + $0x3b0] sm:$0xff]
    %v186 = vld [vmem:[#allocation9 + $0x3b8] sm:$0xff]
    %v187 = vld [vmem:[#allocation9 + $0x3c0] sm:$0xff]
    %v188 = vld [vmem:[#allocation9 + $0x3c8] sm:$0xff]
    %v189 = vld [vmem:[#allocation9 + $0x3d0] sm:$0xff]
    %v190 = vld [vmem:[#allocation9 + $0x3d8] sm:$0xff]
    %v191 = vld [vmem:[#allocation9 + $0x3e0] sm:$0xff]
    %v192 = vld [vmem:[#allocation9 + $0x3e8] sm:$0xff]
    %v193 = vld [vmem:[#allocation9 + $0x3f0] sm:$0xff]
    %v194 = vld [vmem:[#allocation9 + $0x3f8] sm:$0xff]
    %s195 = sld [smem:[#allocation5]]
    %v196 = vstv %s195
    %197 = vmatprep.subr.mxu0 0.0
    %198 = vmatpush1.msra.mxu0 %v67
    %199 = vmatprep.subr.mxu0 0.0
    %200 = vmatpush1.msra.mxu0 %v68
    %201 = vmatprep.subr.mxu0 0.0
    %202 = vmatpush1.msra.mxu0 %v69
    %203 = vmatprep.subr.mxu0 0.0
    %204 = vmatpush1.msra.mxu0 %v70
    %205 = vmatprep.subr.mxu0 0.0
    %206 = vmatpush1.msra.mxu0 %v71
    %207 = vmatprep.subr.mxu0 0.0
    %208 = vmatpush1.msra.mxu0 %v72
    %209 = vmatprep.subr.mxu0 0.0
    %210 = vmatpush1.msra.mxu0 %v73
    %211 = vmatprep.subr.mxu0 0.0
    %212 = vmatpush1.msra.mxu0 %v74
    %213 = vmatprep.subr.mxu0 0.0
    %214 = vmatpush1.msra.mxu0 %v75
    %215 = vmatprep.subr.mxu0 0.0
    %216 = vmatpush1.msra.mxu0 %v76
    %217 = vmatprep.subr.mxu0 0.0
    %218 = vmatpush1.msra.mxu0 %v77
    %219 = vmatprep.subr.mxu0 0.0
    %220 = vmatpush1.msra.mxu0 %v78
    %221 = vmatprep.subr.mxu0 0.0
    %222 = vmatpush1.msra.mxu0 %v79
    %223 = vmatprep.subr.mxu0 0.0
    %224 = vmatpush1.msra.mxu0 %v80
    %225 = vmatprep.subr.mxu0 0.0
    %226 = vmatpush1.msra.mxu0 %v81
    %227 = vmatprep.subr.mxu0 0.0
    %228 = vmatpush1.msra.mxu0 %v82
    %229 = vmatprep.subr.mxu0 0.0
    %230 = vmatpush1.msra.mxu0 %v83
    %231 = vmatprep.subr.mxu0 0.0
    %232 = vmatpush1.msra.mxu0 %v84
    %233 = vmatprep.subr.mxu0 0.0
    %234 = vmatpush1.msra.mxu0 %v85
    %235 = vmatprep.subr.mxu0 0.0
    %236 = vmatpush1.msra.mxu0 %v86
    %237 = vmatprep.subr.mxu0 0.0
    %238 = vmatpush1.msra.mxu0 %v87
    %239 = vmatprep.subr.mxu0 0.0
    %240 = vmatpush1.msra.mxu0 %v88
    %241 = vmatprep.subr.mxu0 0.0
    %242 = vmatpush1.msra.mxu0 %v89
    %243 = vmatprep.subr.mxu0 0.0
    %244 = vmatpush1.msra.mxu0 %v90
    %245 = vmatprep.subr.mxu0 0.0
    %246 = vmatpush1.msra.mxu0 %v91
    %247 = vmatprep.subr.mxu0 0.0
    %248 = vmatpush1.msra.mxu0 %v92
    %249 = vmatprep.subr.mxu0 0.0
    %250 = vmatpush1.msra.mxu0 %v93
    %251 = vmatprep.subr.mxu0 0.0
    %252 = vmatpush1.msra.mxu0 %v94
    %253 = vmatprep.subr.mxu0 0.0
    %254 = vmatpush1.msra.mxu0 %v95
    %255 = vmatprep.subr.mxu0 0.0
    %256 = vmatpush1.msra.mxu0 %v96
    %257 = vmatprep.subr.mxu0 0.0
    %258 = vmatpush1.msra.mxu0 %v97
    %259 = vmatprep.subr.mxu0 0.0
    %260 = vmatpush1.msra.mxu0 %v98
    %261 = vmatprep.mubr.f32.mxu0 %v52
    %262 = vmatmul.mubr.f32.gmra.mrb[0].mxu0 %v51
    %v263 = vpop.f32.mrb[0].mxu0
    %v264 = vadd.f32 %v196, %v263
    %v265 = vpop.f32.mrb[0].mxu0
    %266 = vmatprep.mubr.f32.mxu0 %v60
    %267 = vmatmul.mubr.f32.gmra.mrb[0].mxu0 %v59
    %v268 = vpop.f32.mrb[0].mxu0
    %v269 = vadd.f32 %v196, %v268
    %v270 = vpop.f32.mrb[0].mxu0
    %271 = vdwg.mxu0
    %272 = vmatprep.subr.mxu0 0.0
    %273 = vmatpush1.msra.mxu0 %v99
    %274 = vmatprep.subr.mxu0 0.0
    %275 = vmatpush1.msra.mxu0 %v100
    %276 = vmatprep.subr.mxu0 0.0
    %277 = vmatpush1.msra.mxu0 %v101
    %278 = vmatprep.subr.mxu0 0.0
    %279 = vmatpush1.msra.mxu0 %v102
    %280 = vmatprep.subr.mxu0 0.0
    %281 = vmatpush1.msra.mxu0 %v103
    %282 = vmatprep.subr.mxu0 0.0
    %283 = vmatpush1.msra.mxu0 %v104
    %284 = vmatprep.subr.mxu0 0.0
    %285 = vmatpush1.msra.mxu0 %v105
    %286 = vmatprep.subr.mxu0 0.0
    %287 = vmatpush1.msra.mxu0 %v106
    %288 = vmatprep.subr.mxu0 0.0
    %289 = vmatpush1.msra.mxu0 %v107
    %290 = vmatprep.subr.mxu0 0.0
    %291 = vmatpush1.msra.mxu0 %v108
    %292 = vmatprep.subr.mxu0 0.0
    %293 = vmatpush1.msra.mxu0 %v109
    %294 = vmatprep.subr.mxu0 0.0
    %295 = vmatpush1.msra.mxu0 %v110
    %296 = vmatprep.subr.mxu0 0.0
    %297 = vmatpush1.msra.mxu0 %v111
    %298 = vmatprep.subr.mxu0 0.0
    %299 = vmatpush1.msra.mxu0 %v112
    %300 = vmatprep.subr.mxu0 0.0
    %301 = vmatpush1.msra.mxu0 %v113
    %302 = vmatprep.subr.mxu0 0.0
    %303 = vmatpush1.msra.mxu0 %v114
    %304 = vmatprep.subr.mxu0 0.0
    %305 = vmatpush1.msra.mxu0 %v115
    %306 = vmatprep.subr.mxu0 0.0
    %307 = vmatpush1.msra.mxu0 %v116
    %308 = vmatprep.subr.mxu0 0.0
    %309 = vmatpush1.msra.mxu0 %v117
    %310 = vmatprep.subr.mxu0 0.0
    %311 = vmatpush1.msra.mxu0 %v118
    %312 = vmatprep.subr.mxu0 0.0
    %313 = vmatpush1.msra.mxu0 %v119
    %314 = vmatprep.subr.mxu0 0.0
    %315 = vmatpush1.msra.mxu0 %v120
    %316 = vmatprep.subr.mxu0 0.0
    %317 = vmatpush1.msra.mxu0 %v121
    %318 = vmatprep.subr.mxu0 0.0
    %319 = vmatpush1.msra.mxu0 %v122
    %320 = vmatprep.subr.mxu0 0.0
    %321 = vmatpush1.msra.mxu0 %v123
    %322 = vmatprep.subr.mxu0 0.0
    %323 = vmatpush1.msra.mxu0 %v124
    %324 = vmatprep.subr.mxu0 0.0
    %325 = vmatpush1.msra.mxu0 %v125
    %326 = vmatprep.subr.mxu0 0.0
    %327 = vmatpush1.msra.mxu0 %v126
    %328 = vmatprep.subr.mxu0 0.0
    %329 = vmatpush1.msra.mxu0 %v127
    %330 = vmatprep.subr.mxu0 0.0
    %331 = vmatpush1.msra.mxu0 %v128
    %332 = vmatprep.subr.mxu0 0.0
    %333 = vmatpush1.msra.mxu0 %v129
    %334 = vmatprep.subr.mxu0 0.0
    %335 = vmatpush1.msra.mxu0 %v130
    %336 = vmatprep.mubr.f32.mxu0 %v54
    %337 = vmatmul.mubr.f32.gmra.mrb[0].mxu0 %v53
    %v338 = vpop.f32.mrb[0].mxu0
    %v339 = vadd.f32 %v264, %v338
    %v340 = vpop.f32.mrb[0].mxu0
    %341 = vmatprep.mubr.f32.mxu0 %v62
    %342 = vmatmul.mubr.f32.gmra.mrb[0].mxu0 %v61
    %v343 = vpop.f32.mrb[0].mxu0
    %v344 = vadd.f32 %v269, %v343
    %v345 = vpop.f32.mrb[0].mxu0
    %346 = vdwg.mxu0
    %347 = vmatprep.subr.mxu0 0.0
    %348 = vmatpush1.msra.mxu0 %v131
    %349 = vmatprep.subr.mxu0 0.0
    %350 = vmatpush1.msra.mxu0 %v132
    %351 = vmatprep.subr.mxu0 0.0
    %352 = vmatpush1.msra.mxu0 %v133
    %353 = vmatprep.subr.mxu0 0.0
    %354 = vmatpush1.msra.mxu0 %v134
    %355 = vmatprep.subr.mxu0 0.0
    %356 = vmatpush1.msra.mxu0 %v135
    %357 = vmatprep.subr.mxu0 0.0
    %358 = vmatpush1.msra.mxu0 %v136
    %359 = vmatprep.subr.mxu0 0.0
    %360 = vmatpush1.msra.mxu0 %v137
    %361 = vmatprep.subr.mxu0 0.0
    %362 = vmatpush1.msra.mxu0 %v138
    %363 = vmatprep.subr.mxu0 0.0
    %364 = vmatpush1.msra.mxu0 %v139
    %365 = vmatprep.subr.mxu0 0.0
    %366 = vmatpush1.msra.mxu0 %v140
    %367 = vmatprep.subr.mxu0 0.0
    %368 = vmatpush1.msra.mxu0 %v141
    %369 = vmatprep.subr.mxu0 0.0
    %370 = vmatpush1.msra.mxu0 %v142
    %371 = vmatprep.subr.mxu0 0.0
    %372 = vmatpush1.msra.mxu0 %v143
    %373 = vmatprep.subr.mxu0 0.0
    %374 = vmatpush1.msra.mxu0 %v144
    %375 = vmatprep.subr.mxu0 0.0
    %376 = vmatpush1.msra.mxu0 %v145
    %377 = vmatprep.subr.mxu0 0.0
    %378 = vmatpush1.msra.mxu0 %v146
    %379 = vmatprep.subr.mxu0 0.0
    %380 = vmatpush1.msra.mxu0 %v147
    %381 = vmatprep.subr.mxu0 0.0
    %382 = vmatpush1.msra.mxu0 %v148
    %383 = vmatprep.subr.mxu0 0.0
    %384 = vmatpush1.msra.mxu0 %v149
    %385 = vmatprep.subr.mxu0 0.0
    %386 = vmatpush1.msra.mxu0 %v150
    %387 = vmatprep.subr.mxu0 0.0
    %388 = vmatpush1.msra.mxu0 %v151
    %389 = vmatprep.subr.mxu0 0.0
    %390 = vmatpush1.msra.mxu0 %v152
    %391 = vmatprep.subr.mxu0 0.0
    %392 = vmatpush1.msra.mxu0 %v153
    %393 = vmatprep.subr.mxu0 0.0
    %394 = vmatpush1.msra.mxu0 %v154
    %395 = vmatprep.subr.mxu0 0.0
    %396 = vmatpush1.msra.mxu0 %v155
    %397 = vmatprep.subr.mxu0 0.0
    %398 = vmatpush1.msra.mxu0 %v156
    %399 = vmatprep.subr.mxu0 0.0
    %400 = vmatpush1.msra.mxu0 %v157
    %401 = vmatprep.subr.mxu0 0.0
    %402 = vmatpush1.msra.mxu0 %v158
    %403 = vmatprep.subr.mxu0 0.0
    %404 = vmatpush1.msra.mxu0 %v159
    %405 = vmatprep.subr.mxu0 0.0
    %406 = vmatpush1.msra.mxu0 %v160
    %407 = vmatprep.subr.mxu0 0.0
    %408 = vmatpush1.msra.mxu0 %v161
    %409 = vmatprep.subr.mxu0 0.0
    %410 = vmatpush1.msra.mxu0 %v162
    %411 = vmatprep.mubr.f32.mxu0 %v56
    %412 = vmatmul.mubr.f32.gmra.mrb[0].mxu0 %v55
    %v413 = vpop.f32.mrb[0].mxu0
    %v414 = vadd.f32 %v339, %v413
    %v415 = vpop.f32.mrb[0].mxu0
    %416 = vmatprep.mubr.f32.mxu0 %v64
    %417 = vmatmul.mubr.f32.gmra.mrb[0].mxu0 %v63
    %v418 = vpop.f32.mrb[0].mxu0
    %v419 = vadd.f32 %v344, %v418
    %v420 = vpop.f32.mrb[0].mxu0
    %421 = vdwg.mxu0
    %422 = vmatprep.subr.mxu0 0.0
    %423 = vmatpush1.msra.mxu0 %v163
    %424 = vmatprep.subr.mxu0 0.0
    %425 = vmatpush1.msra.mxu0 %v164
    %426 = vmatprep.subr.mxu0 0.0
    %427 = vmatpush1.msra.mxu0 %v165
    %428 = vmatprep.subr.mxu0 0.0
    %429 = vmatpush1.msra.mxu0 %v166
    %430 = vmatprep.subr.mxu0 0.0
    %431 = vmatpush1.msra.mxu0 %v167
    %432 = vmatprep.subr.mxu0 0.0
    %433 = vmatpush1.msra.mxu0 %v168
    %434 = vmatprep.subr.mxu0 0.0
    %435 = vmatpush1.msra.mxu0 %v169
    %436 = vmatprep.subr.mxu0 0.0
    %437 = vmatpush1.msra.mxu0 %v170
    %438 = vmatprep.subr.mxu0 0.0
    %439 = vmatpush1.msra.mxu0 %v171
    %440 = vmatprep.subr.mxu0 0.0
    %441 = vmatpush1.msra.mxu0 %v172
    %442 = vmatprep.subr.mxu0 0.0
    %443 = vmatpush1.msra.mxu0 %v173
    %444 = vmatprep.subr.mxu0 0.0
    %445 = vmatpush1.msra.mxu0 %v174
    %446 = vmatprep.subr.mxu0 0.0
    %447 = vmatpush1.msra.mxu0 %v175
    %448 = vmatprep.subr.mxu0 0.0
    %449 = vmatpush1.msra.mxu0 %v176
    %450 = vmatprep.subr.mxu0 0.0
    %451 = vmatpush1.msra.mxu0 %v177
    %452 = vmatprep.subr.mxu0 0.0
    %453 = vmatpush1.msra.mxu0 %v178
    %454 = vmatprep.subr.mxu0 0.0
    %455 = vmatpush1.msra.mxu0 %v179
    %456 = vmatprep.subr.mxu0 0.0
    %457 = vmatpush1.msra.mxu0 %v180
    %458 = vmatprep.subr.mxu0 0.0
    %459 = vmatpush1.msra.mxu0 %v181
    %460 = vmatprep.subr.mxu0 0.0
    %461 = vmatpush1.msra.mxu0 %v182
    %462 = vmatprep.subr.mxu0 0.0
    %463 = vmatpush1.msra.mxu0 %v183
    %464 = vmatprep.subr.mxu0 0.0
    %465 = vmatpush1.msra.mxu0 %v184
    %466 = vmatprep.subr.mxu0 0.0
    %467 = vmatpush1.msra.mxu0 %v185
    %468 = vmatprep.subr.mxu0 0.0
    %469 = vmatpush1.msra.mxu0 %v186
    %470 = vmatprep.subr.mxu0 0.0
    %471 = vmatpush1.msra.mxu0 %v187
    %472 = vmatprep.subr.mxu0 0.0
    %473 = vmatpush1.msra.mxu0 %v188
    %474 = vmatprep.subr.mxu0 0.0
    %475 = vmatpush1.msra.mxu0 %v189
    %476 = vmatprep.subr.mxu0 0.0
    %477 = vmatpush1.msra.mxu0 %v190
    %478 = vmatprep.subr.mxu0 0.0
    %479 = vmatpush1.msra.mxu0 %v191
    %480 = vmatprep.subr.mxu0 0.0
    %481 = vmatpush1.msra.mxu0 %v192
    %482 = vmatprep.subr.mxu0 0.0
    %483 = vmatpush1.msra.mxu0 %v193
    %484 = vmatprep.subr.mxu0 0.0
    %485 = vmatpush1.msra.mxu0 %v194
    %486 = vmatprep.mubr.f32.mxu0 %v58
    %487 = vmatmul.mubr.f32.gmra.mrb[0].mxu0 %v57
    %v488 = vpop.f32.mrb[0].mxu0
    %v489 = vadd.f32 %v414, %v488
    %v490 = vpop.f32.mrb[0].mxu0
    %491 = vmatprep.mubr.f32.mxu0 %v66
    %492 = vmatmul.mubr.f32.gmra.mrb[0].mxu0 %v65
    %v493 = vpop.f32.mrb[0].mxu0
    %v494 = vadd.f32 %v419, %v493
    %v495 = vpop.f32.mrb[0].mxu0
    %496 = vdwg.mxu0
    %v497 = vmax.f32 %v489, 0.0
    %v498 = vmax.f32 %v494, 0.0
    %s499 = smul.u32 0, 16
    %v500 = vlaneseq
    %v501 = vshrl.u32 %v500, 7
    %v502 = vadd.s32 %v501, 8
    %v503 = vstv %s499
    %v504 = vadd.s32 %v503, %v501
    %v505 = vadd.s32 %v503, %v502
    %v506 = vmul.u32 %v504, 128
    %v507 = vmul.u32 %v505, 128
    %v508 = vlaneseq
    %v509 = vand.u32 %v508, 127
    %v510 = vadd.s32 %v506, %v509
    %v511 = vadd.s32 %v507, %v509
    %vm512 = vcmp.lt.s32.totalorder %v510, 2000
    %vm513 = vcmp.lt.s32.totalorder %v511, 2000
    %v514 = vsel %vm512, %v497, -1e+30
    %v515 = vsel %vm513, %v498, -1e+30
    %v516 = vld [vmem:[#allocation2] sm:$0x1]
    %v517 = vmax.f32 %v514, %v515
    %518 = vmax.xlane.f32.xlu0 %v517
    %v519 = vpop.xlane.xlu0 %518
    %v520 = vrot.slane %v519, 4
    %v521 = vmax.f32 %v519, %v520
    %v522 = vrot.slane %v521, 2
    %v523 = vmax.f32 %v521, %v522
    %v524 = vrot.slane %v523, 1
    %v525 = vmax.f32 %v523, %v524
    %s526 = vtos %v525
    %v527 = vstv %s526
    %v528 = vmax.f32 %v516, %v527
    %v530 = vlaneseq
    %v531 = vshrl.u32 %v530, 7
    %v532 = vsub.s32 0, %v531
    %v533 = vrot.slane %v528, %v532
    %534 = vset.pattern.permute.xlu0 0
    %535 = vperm.xlu0 %534, %v533
    %v536 = vpop.permute.xlu0 %535
    %v538 = vsub.f32 %v514, %v536
    %v539 = vsub.f32 %v515, %v536
    %v540 = vmul.f32 %v538, 1.442695
    %v541 = vpow.pop %v540
    %v542 = vmul.f32 %v539, 1.442695
    %v543 = vpow.pop %v542
    %v544 = vld [vmem:[#allocation3] sm:$0x1]
    %v545 = vsub.f32 %v516, %v528
    %v546 = vmul.f32 %v545, 1.442695
    %v547 = vpow.pop %v546
    %v548 = vmul.f32 %v544, %v547
    %v549 = vadd.f32 %v541, %v543
    %550 = vadd.xlane.f32.xlu0 %v549
    %v551 = vpop.xlane.xlu0 %550
    %v552 = vrot.slane %v551, 4
    %v553 = vadd.f32 %v551, %v552
    %v554 = vrot.slane %v553, 2
    %v555 = vadd.f32 %v553, %v554
    %v556 = vrot.slane %v555, 1
    %v557 = vadd.f32 %v555, %v556
    %s558 = vtos %v557
    %v559 = vstv %s558
    %v560 = vadd.f32 %v548, %v559
    %vm561 = vcmask 0
    %562 = vst.msk [vmem:[#allocation3] sm:$0x1] %vm561, %v560
    %563 = vst.msk [vmem:[#allocation2] sm:$0x1] %vm561, %v528
    %564 = vset.pattern.permute.xlu0 0
    %565 = vperm.xlu0 %564, %v528
    %v566 = vpop.permute.xlu0 %565
    %v568 = vlaneseq
    %v569 = vshrl.u32 %v568, 7
    %v570 = vsub.s32 0, %v569
    %v571 = vrot.slane %v566, %v570
    %572 = vst [vmem:[#allocation4] sm:$0x1] %v571
    %s573 = scalar_lea.vmem [#allocation11], %s499
    %574 = vst [vmem:[%s573] sm:$0xff] %v541
    %575 = vst [vmem:[%s573 + $0x8] sm:$0xff] %v543
    // Predicated region
    $region26: #{tpu_custom_call.1} parent=1 // pred_check
      %p576 = pneg %p44
    $region27: #{tpu_custom_call.1} parent=1 // pred_check_branch
      %578 = sbr.rel (%p576) target = $region29
    $region28: #{tpu_custom_call.1} parent=1 // pred_region
      %v579 = vld [vmem:[#allocation2] sm:$0x1]
      %v580 = vld [vmem:[#allocation3] sm:$0x1]
      %v581 = vrcp.pop %v580
      %v582 = vmul.f32 1.0, %v581
      %v583 = vld [vmem:[#allocation4] sm:$0x1]
      %585 = vset.pattern.permute.xlu0 0
      %586 = vperm.xlu0 %585, %v579
      %v587 = vpop.permute.xlu0 %586
      %v589 = vlaneseq
      %v590 = vshrl.u32 %v589, 7
      %v591 = vsub.s32 0, %v590
      %v592 = vrot.slane %v587, %v591
      %v593 = vsub.f32 %v583, %v592
      %v594 = vmul.f32 %v593, 1.442695
      %v595 = vpow.pop %v594
      %597 = vset.pattern.permute.xlu0 0
      %598 = vperm.xlu0 %597, %v582
      %v599 = vpop.permute.xlu0 %598
      %v601 = vlaneseq
      %v602 = vshrl.u32 %v601, 7
      %v603 = vsub.s32 0, %v602
      %v604 = vrot.slane %v599, %v603
      %v605 = vmul.f32 %v595, %v604
      %v606 = vld [vmem:[#allocation11] sm:$0xff]
      %v607 = vld [vmem:[#allocation11 + $0x8] sm:$0xff]
      %v609 = vlaneseq
      %v610 = vshrl.u32 %v609, 7
      %v611 = vsub.s32 0, %v610
      %v612 = vrot.slane %v605, %v611
      %v614 = vmul.f32 %v606, %v612
      %v615 = vmul.f32 %v607, %v612
      %616 = vst [vmem:[#allocation11] sm:$0xff] %v614
      %617 = vst [vmem:[#allocation11 + $0x8] sm:$0xff] %v615
    $region29: #{tpu_custom_call.1} parent=1 // pred_fallthru
      _
    // Predicated region
    $region30: #{tpu_custom_call.1} parent=1 // pred_check
      _
    $region31: #{tpu_custom_call.1} parent=1 // pred_check_branch
      %619 = sbr.rel (0) target = $region33
    $region32: #{tpu_custom_call.1} parent=1 // pred_region
      %s621 = ssub.s32 256, 256
      %622 = vsyncadd [#allocation8], %s621
      %s623 = sshll.u32 [#allocation11], 4
      %s624 = int_to_ptr.vmem [resolvable:$true] %s623
      %629 = dma.vmem_to_hbm [thread:$0]  %s624, 256, %s3, [#allocation8], 128, 128, 8
    $region33: #{tpu_custom_call.1} parent=1 // pred_fallthru
      _
    // Predicated region
    $region34: #{tpu_custom_call.1} parent=1 // pred_check
      _
    $region35: #{tpu_custom_call.1} parent=1 // pred_check_branch
      %631 = sbr.rel (0) target = $region37
    $region36: #{tpu_custom_call.1} parent=1 // pred_region
      %632 = dma.done [#allocation8], 256
    $region37: #{tpu_custom_call.1} parent=1 // pred_fallthru
      _
    %633 = vsyncpa [#allocation7], 1
    %634 = vsyncpa [#allocation10], 1
    %635 = vsyncpa [#allocation8], 1

</llo_original>
